<compile_context>
chip_gen: v6e
topology: v6e:2x2x1
jax: 0.10.0
libtpu: 0.0.40
codegen_flags: <defaults>
</compile_context>

<pallas_src>
import functools

import jax
import jax.numpy as jnp
from jax.experimental import pallas as pl
from jax.experimental.pallas import tpu as pltpu


def _round_up(x, m):
    return (x + m - 1) // m * m


def mlp_kernel(scale_ref, x_ref, *refs):
    """Whole MLP for one batch tile, entirely in VMEM.

    scale_ref: (1,) f32 in SMEM (the `out_range` scalar).
    x_ref:     (tb, in_dim) f32 input tile (unpadded feature dim).
    refs:      [w1, b1, ..., w5, b5, o_ref]
               wN: (in_f, out_f) bf16 weights (natural, unpadded shapes)
               bN: (1, out_f)    f32 biases
               o_ref: (tb, out_dim) f32 output tile (narrow, no padded lanes)
    """
    o_ref = refs[-1]
    wb = refs[:-1]
    n_layers = len(wb) // 2

    # Cast input to bf16 inside the kernel (keeps the HBM read at 4B*in_dim/row).
    h = x_ref[...].astype(jnp.bfloat16)

    y = None
    for li in range(n_layers):
        w_ref = wb[2 * li]
        b_ref = wb[2 * li + 1]
        # bf16 operands, f32 MXU accumulation; small K/N are padded inside MXU.
        y = jnp.dot(h, w_ref[...], preferred_element_type=jnp.float32)
        y = y + b_ref[...]
        if li < n_layers - 1:
            # ReLU; Dropout(p=0.3) is identity in eval mode.
            h = jnp.maximum(y, 0.0).astype(jnp.bfloat16)

    o_ref[...] = (jax.nn.sigmoid(y) * scale_ref[0]).astype(o_ref.dtype)


@functools.partial(jax.jit, static_argnames=("block_b",))
def net_forward(x, params, out_range, *, block_b=2048):
    """x: (B, input_dim) f32.  params: list of (W:(in,out) f32, b:(1,out) f32)."""
    B, in_dim = x.shape
    out_dim = params[-1][0].shape[1]

    # Batch tile: multiple of 16 (bf16 sublane packing); whole small batch in
    # one step; for B >= 32 force at least 2 grid steps (v7x megacore).
    tb = min(block_b, _round_up(B, 16))
    if B >= 32:
        tb = min(tb, _round_up(-(-B // 2), 16))
    b_pad = _round_up(B, tb)

    # Only pad rows if needed (cheap: in_dim columns, no feature padding).
    x_in = x if b_pad == B else jnp.pad(x, ((0, b_pad - B), (0, 0)))

    # Weights to bf16 (MXU-native), biases f32; natural (unpadded) shapes.
    flat_params = []
    for (w, b) in params:
        flat_params += [w.astype(jnp.bfloat16), b.astype(jnp.float32)]

    scale = jnp.asarray(out_range, dtype=jnp.float32).reshape((1,))

    grid = (b_pad // tb,)

    in_specs = [
        pl.BlockSpec(memory_space=pltpu.MemorySpace.SMEM),        # out_range
        pl.BlockSpec((tb, in_dim), lambda i: (i, 0)),             # x tile
    ]
    # Grid-invariant full-array blocks for weights/biases (fetched once).
    for p in flat_params:
        in_specs.append(pl.BlockSpec(p.shape, lambda i: (0, 0)))

    out_spec = pl.BlockSpec((tb, out_dim), lambda i: (i, 0))      # narrow out

    out_p = pl.pallas_call(
        mlp_kernel,
        out_shape=jax.ShapeDtypeStruct((b_pad, out_dim), jnp.float32),
        grid=grid,
        in_specs=in_specs,
        out_specs=out_spec,
        compiler_params=pltpu.CompilerParams(
            dimension_semantics=("parallel",),
            vmem_limit_bytes=48 * 1024 * 1024),
    )(scale, x_in, *flat_params)

    return out_p if b_pad == B else out_p[:B]


def init_params(key, input_dim=10):
    """Deterministic PyTorch-style init of the 5 Linears, stored as
    (in_features, out_features) weights and (1, out_features) biases."""
    dims = [input_dim, 512, 256, 64, 32, input_dim]
    params = []
    for li in range(len(dims) - 1):
        fan_in, fan_out = dims[li], dims[li + 1]
        key, kw, kb = jax.random.split(key, 3)
        bound = 1.0 / jnp.sqrt(jnp.float32(fan_in))
        w = jax.random.uniform(kw, (fan_in, fan_out), jnp.float32, -bound, bound)
        b = jax.random.uniform(kb, (1, fan_out), jnp.float32, -bound, bound)
        params.append((w, b))
    return params


def net_forward_ref(x, params, out_range):
    """Pure-JAX reference mirroring the kernel's bf16-operand / f32-accum math."""
    h = x.astype(jnp.bfloat16)
    y = None
    for i, (w, b) in enumerate(params):
        y = jnp.dot(h, w.astype(jnp.bfloat16),
                    preferred_element_type=jnp.float32) + b
        if i < len(params) - 1:
            h = jnp.maximum(y, 0.0).astype(jnp.bfloat16)
    return jax.nn.sigmoid(y) * out_range


if __name__ == "__main__":
    INPUT_DIM = 10
    OUT_RANGE = 5.0

    params = init_params(jax.random.PRNGKey(0), input_dim=INPUT_DIM)
    key = jax.random.PRNGKey(0)

    # Small batch: single grid step.
    BATCH = 16
    key, kx = jax.random.split(key)
    x = jax.random.normal(kx, (BATCH, INPUT_DIM), dtype=jnp.float32)
    out = jax.block_until_ready(net_forward(x, params, OUT_RANGE))
    ref = net_forward_ref(x, params, OUT_RANGE)
    assert out.shape == (BATCH, INPUT_DIM)
    assert jnp.allclose(out, ref, atol=5e-3, rtol=5e-3), "mismatch (small batch)"

    # Ragged batch exercising multi-step grid + row padding/slicing.
    B2 = 250
    key, kx2 = jax.random.split(key)
    x2 = jax.random.normal(kx2, (B2, INPUT_DIM), dtype=jnp.float32)
    out2 = jax.block_until_ready(net_forward(x2, params, OUT_RANGE, block_b=64))
    ref2 = net_forward_ref(x2, params, OUT_RANGE)
    assert out2.shape == (B2, INPUT_DIM)
    assert jnp.allclose(out2, ref2, atol=5e-3, rtol=5e-3), "mismatch (ragged batch)"

    print("KERNEL_OK")
</pallas_src>

<mosaic_0001>
module attributes {stable_mosaic.version = 11 : i64} {
  func.func @mlp_kernel(%arg0: i32, %arg1: memref<1xf32, #tpu.memory_space<smem>>, %arg2: memref<16x10xf32, #tpu.memory_space<vmem>>, %arg3: memref<10x512xbf16, #tpu.memory_space<vmem>>, %arg4: memref<1x512xf32, #tpu.memory_space<vmem>>, %arg5: memref<512x256xbf16, #tpu.memory_space<vmem>>, %arg6: memref<1x256xf32, #tpu.memory_space<vmem>>, %arg7: memref<256x64xbf16, #tpu.memory_space<vmem>>, %arg8: memref<1x64xf32, #tpu.memory_space<vmem>>, %arg9: memref<64x32xbf16, #tpu.memory_space<vmem>>, %arg10: memref<1x32xf32, #tpu.memory_space<vmem>>, %arg11: memref<32x10xbf16, #tpu.memory_space<vmem>>, %arg12: memref<1x10xf32, #tpu.memory_space<vmem>>, %arg13: memref<16x10xf32, #tpu.memory_space<vmem>>) attributes {dimension_semantics = [#tpu.dimension_semantics<parallel>], iteration_bounds = array<i64: 1>, scalar_prefetch = 0 : i64, scratch_operands = 0 : i64, tpu.core_type = #tpu.core_type<tc>, window_params = [{transform_indices = @transform_0, window_bounds = array<i64: 1>}, {transform_indices = @transform_1, window_bounds = array<i64: 16, 10>}, {pipeline_mode = #tpu.pipeline_mode<synchronous>, transform_indices = @transform_2, window_bounds = array<i64: 10, 512>}, {pipeline_mode = #tpu.pipeline_mode<synchronous>, transform_indices = @transform_3, window_bounds = array<i64: 1, 512>}, {pipeline_mode = #tpu.pipeline_mode<synchronous>, transform_indices = @transform_4, window_bounds = array<i64: 512, 256>}, {pipeline_mode = #tpu.pipeline_mode<synchronous>, transform_indices = @transform_5, window_bounds = array<i64: 1, 256>}, {pipeline_mode = #tpu.pipeline_mode<synchronous>, transform_indices = @transform_6, window_bounds = array<i64: 256, 64>}, {pipeline_mode = #tpu.pipeline_mode<synchronous>, transform_indices = @transform_7, window_bounds = array<i64: 1, 64>}, {pipeline_mode = #tpu.pipeline_mode<synchronous>, transform_indices = @transform_8, window_bounds = array<i64: 64, 32>}, {pipeline_mode = #tpu.pipeline_mode<synchronous>, transform_indices = @transform_9, window_bounds = array<i64: 1, 32>}, {pipeline_mode = #tpu.pipeline_mode<synchronous>, transform_indices = @transform_10, window_bounds = array<i64: 32, 10>}, {pipeline_mode = #tpu.pipeline_mode<synchronous>, transform_indices = @transform_11, window_bounds = array<i64: 1, 10>}, {transform_indices = @transform_12, window_bounds = array<i64: 16, 10>}]} {
    %c0 = arith.constant 0 : index
    %c0_0 = arith.constant 0 : index
    %0 = vector.load %arg2[%c0, %c0_0] : memref<16x10xf32, #tpu.memory_space<vmem>>, vector<16x10xf32>
    %1 = arith.truncf %0 : vector<16x10xf32> to vector<16x10xbf16>
    %c0_1 = arith.constant 0 : index
    %c0_2 = arith.constant 0 : index
    %2 = vector.load %arg3[%c0_1, %c0_2] : memref<10x512xbf16, #tpu.memory_space<vmem>>, vector<10x512xbf16>
    %cst = arith.constant dense<0.000000e+00> : vector<16x512xf32>
    %3 = tpu.matmul %1, %2, %cst {dimension_numbers = #tpu.dot_dimension_numbers<[1], [0], [0], [1], [0, 0, 1, 1], [], []>} : vector<16x10xbf16>, vector<10x512xbf16>, vector<16x512xf32> -> vector<16x512xf32>
    %c0_3 = arith.constant 0 : index
    %c0_4 = arith.constant 0 : index
    %4 = vector.load %arg4[%c0_3, %c0_4] : memref<1x512xf32, #tpu.memory_space<vmem>>, vector<1x512xf32>
    %5 = vector.broadcast %4 : vector<1x512xf32> to vector<16x512xf32>
    %6 = arith.addf %3, %5 : vector<16x512xf32>
    %cst_5 = arith.constant 0.000000e+00 : f32
    %7 = vector.broadcast %cst_5 : f32 to vector<16x512xf32>
    %8 = arith.maximumf %6, %7 : vector<16x512xf32>
    %9 = arith.truncf %8 : vector<16x512xf32> to vector<16x512xbf16>
    %c0_6 = arith.constant 0 : index
    %c0_7 = arith.constant 0 : index
    %10 = vector.load %arg5[%c0_6, %c0_7] : memref<512x256xbf16, #tpu.memory_space<vmem>>, vector<512x256xbf16>
    %cst_8 = arith.constant dense<0.000000e+00> : vector<16x256xf32>
    %11 = tpu.matmul %9, %10, %cst_8 {dimension_numbers = #tpu.dot_dimension_numbers<[1], [0], [0], [1], [0, 0, 1, 1], [], []>} : vector<16x512xbf16>, vector<512x256xbf16>, vector<16x256xf32> -> vector<16x256xf32>
    %c0_9 = arith.constant 0 : index
    %c0_10 = arith.constant 0 : index
    %12 = vector.load %arg6[%c0_9, %c0_10] : memref<1x256xf32, #tpu.memory_space<vmem>>, vector<1x256xf32>
    %13 = vector.broadcast %12 : vector<1x256xf32> to vector<16x256xf32>
    %14 = arith.addf %11, %13 : vector<16x256xf32>
    %cst_11 = arith.constant 0.000000e+00 : f32
    %15 = vector.broadcast %cst_11 : f32 to vector<16x256xf32>
    %16 = arith.maximumf %14, %15 : vector<16x256xf32>
    %17 = arith.truncf %16 : vector<16x256xf32> to vector<16x256xbf16>
    %c0_12 = arith.constant 0 : index
    %c0_13 = arith.constant 0 : index
    %18 = vector.load %arg7[%c0_12, %c0_13] : memref<256x64xbf16, #tpu.memory_space<vmem>>, vector<256x64xbf16>
    %cst_14 = arith.constant dense<0.000000e+00> : vector<16x64xf32>
    %19 = tpu.matmul %17, %18, %cst_14 {dimension_numbers = #tpu.dot_dimension_numbers<[1], [0], [0], [1], [0, 0, 1, 1], [], []>} : vector<16x256xbf16>, vector<256x64xbf16>, vector<16x64xf32> -> vector<16x64xf32>
    %c0_15 = arith.constant 0 : index
    %c0_16 = arith.constant 0 : index
    %20 = vector.load %arg8[%c0_15, %c0_16] : memref<1x64xf32, #tpu.memory_space<vmem>>, vector<1x64xf32>
    %21 = vector.broadcast %20 : vector<1x64xf32> to vector<16x64xf32>
    %22 = arith.addf %19, %21 : vector<16x64xf32>
    %cst_17 = arith.constant 0.000000e+00 : f32
    %23 = vector.broadcast %cst_17 : f32 to vector<16x64xf32>
    %24 = arith.maximumf %22, %23 : vector<16x64xf32>
    %25 = arith.truncf %24 : vector<16x64xf32> to vector<16x64xbf16>
    %c0_18 = arith.constant 0 : index
    %c0_19 = arith.constant 0 : index
    %26 = vector.load %arg9[%c0_18, %c0_19] : memref<64x32xbf16, #tpu.memory_space<vmem>>, vector<64x32xbf16>
    %cst_20 = arith.constant dense<0.000000e+00> : vector<16x32xf32>
    %27 = tpu.matmul %25, %26, %cst_20 {dimension_numbers = #tpu.dot_dimension_numbers<[1], [0], [0], [1], [0, 0, 1, 1], [], []>} : vector<16x64xbf16>, vector<64x32xbf16>, vector<16x32xf32> -> vector<16x32xf32>
    %c0_21 = arith.constant 0 : index
    %c0_22 = arith.constant 0 : index
    %28 = vector.load %arg10[%c0_21, %c0_22] : memref<1x32xf32, #tpu.memory_space<vmem>>, vector<1x32xf32>
    %29 = vector.broadcast %28 : vector<1x32xf32> to vector<16x32xf32>
    %30 = arith.addf %27, %29 : vector<16x32xf32>
    %cst_23 = arith.constant 0.000000e+00 : f32
    %31 = vector.broadcast %cst_23 : f32 to vector<16x32xf32>
    %32 = arith.maximumf %30, %31 : vector<16x32xf32>
    %33 = arith.truncf %32 : vector<16x32xf32> to vector<16x32xbf16>
    %c0_24 = arith.constant 0 : index
    %c0_25 = arith.constant 0 : index
    %34 = vector.load %arg11[%c0_24, %c0_25] : memref<32x10xbf16, #tpu.memory_space<vmem>>, vector<32x10xbf16>
    %cst_26 = arith.constant dense<0.000000e+00> : vector<16x10xf32>
    %35 = tpu.matmul %33, %34, %cst_26 {dimension_numbers = #tpu.dot_dimension_numbers<[1], [0], [0], [1], [0, 0, 1, 1], [], []>} : vector<16x32xbf16>, vector<32x10xbf16>, vector<16x10xf32> -> vector<16x10xf32>
    %c0_27 = arith.constant 0 : index
    %c0_28 = arith.constant 0 : index
    %36 = vector.load %arg12[%c0_27, %c0_28] : memref<1x10xf32, #tpu.memory_space<vmem>>, vector<1x10xf32>
    %37 = vector.broadcast %36 : vector<1x10xf32> to vector<16x10xf32>
    %38 = arith.addf %35, %37 : vector<16x10xf32>
    %39 = arith.negf %38 : vector<16x10xf32>
    %40 = math.exp %39 : vector<16x10xf32>
    %cst_29 = arith.constant 1.000000e+00 : f32
    %41 = vector.broadcast %cst_29 : f32 to vector<16x10xf32>
    %42 = arith.addf %41, %40 : vector<16x10xf32>
    %43 = arith.divf %41, %42 : vector<16x10xf32>
    %c0_30 = arith.constant 0 : index
    %44 = memref.load %arg1[%c0_30] : memref<1xf32, #tpu.memory_space<smem>>
    %45 = vector.broadcast %44 : f32 to vector<16x10xf32>
    %46 = arith.mulf %43, %45 : vector<16x10xf32>
    %c0_31 = arith.constant 0 : index
    %c0_32 = arith.constant 0 : index
    %47 = vector.load %arg13[%c0_31, %c0_32] : memref<16x10xf32, #tpu.memory_space<vmem>>, vector<16x10xf32>
    tpu.vector_store %arg13[%c0_31, %c0_32], %46 {strides = array<i32>} : memref<16x10xf32, #tpu.memory_space<vmem>>, vector<16x10xf32>,
    return
  }
  func.func @transform_0(%arg0: i32) -> i32 {
    %c0_i32 = arith.constant 0 : i32
    %c0_i32_0 = arith.constant 0 : i32
    return %c0_i32 : i32
  }
  func.func @transform_1(%arg0: i32) -> (i32, i32) {
    %c0_i32 = arith.constant 0 : i32
    %c0_i32_0 = arith.constant 0 : i32
    return %arg0, %c0_i32 : i32, i32
  }
  func.func @transform_2(%arg0: i32) -> (i32, i32) {
    %c0_i32 = arith.constant 0 : i32
    %c0_i32_0 = arith.constant 0 : i32
    %c0_i32_1 = arith.constant 0 : i32
    return %c0_i32, %c0_i32_0 : i32, i32
  }
  func.func @transform_3(%arg0: i32) -> (i32, i32) {
    %c0_i32 = arith.constant 0 : i32
    %c0_i32_0 = arith.constant 0 : i32
    %c0_i32_1 = arith.constant 0 : i32
    return %c0_i32, %c0_i32_0 : i32, i32
  }
  func.func @transform_4(%arg0: i32) -> (i32, i32) {
    %c0_i32 = arith.constant 0 : i32
    %c0_i32_0 = arith.constant 0 : i32
    %c0_i32_1 = arith.constant 0 : i32
    return %c0_i32, %c0_i32_0 : i32, i32
  }
  func.func @transform_5(%arg0: i32) -> (i32, i32) {
    %c0_i32 = arith.constant 0 : i32
    %c0_i32_0 = arith.constant 0 : i32
    %c0_i32_1 = arith.constant 0 : i32
    return %c0_i32, %c0_i32_0 : i32, i32
  }
  func.func @transform_6(%arg0: i32) -> (i32, i32) {
    %c0_i32 = arith.constant 0 : i32
    %c0_i32_0 = arith.constant 0 : i32
    %c0_i32_1 = arith.constant 0 : i32
    return %c0_i32, %c0_i32_0 : i32, i32
  }
  func.func @transform_7(%arg0: i32) -> (i32, i32) {
    %c0_i32 = arith.constant 0 : i32
    %c0_i32_0 = arith.constant 0 : i32
    %c0_i32_1 = arith.constant 0 : i32
    return %c0_i32, %c0_i32_0 : i32, i32
  }
  func.func @transform_8(%arg0: i32) -> (i32, i32) {
    %c0_i32 = arith.constant 0 : i32
    %c0_i32_0 = arith.constant 0 : i32
    %c0_i32_1 = arith.constant 0 : i32
    return %c0_i32, %c0_i32_0 : i32, i32
  }
  func.func @transform_9(%arg0: i32) -> (i32, i32) {
    %c0_i32 = arith.constant 0 : i32
    %c0_i32_0 = arith.constant 0 : i32
    %c0_i32_1 = arith.constant 0 : i32
    return %c0_i32, %c0_i32_0 : i32, i32
  }
  func.func @transform_10(%arg0: i32) -> (i32, i32) {
    %c0_i32 = arith.constant 0 : i32
    %c0_i32_0 = arith.constant 0 : i32
    %c0_i32_1 = arith.constant 0 : i32
    return %c0_i32, %c0_i32_0 : i32, i32
  }
  func.func @transform_11(%arg0: i32) -> (i32, i32) {
    %c0_i32 = arith.constant 0 : i32
    %c0_i32_0 = arith.constant 0 : i32
    %c0_i32_1 = arith.constant 0 : i32
    return %c0_i32, %c0_i32_0 : i32, i32
  }
  func.func @transform_12(%arg0: i32) -> (i32, i32) {
    %c0_i32 = arith.constant 0 : i32
    %c0_i32_0 = arith.constant 0 : i32
    return %arg0, %c0_i32 : i32, i32
  }
}

</mosaic_0001>

<llo_original>
// kernel: net_forward.1
$region0: #{net_forward.1}
  #allocation0 [shape = 'u32[]', space=smem, size = 0x4, offset = 0x4, fixed_abs, tag = 'smem constant byte address 0x4 - core index']
  #allocation1 [shape = 'u32[144,128]{1,0:T(1,128)}', space=vmem, size = 0x12000, scoped, tag = 'internal scratch']
  #allocation2 [shape = 'f32[1]{0:T(128)S(6)}', space=smem, size = 0x200, scoped, tag = 'scoped memory for net_forward.1']
  %s0 = inlined_call_operand.<no memory space> [shape: f32[1], index: 0, kind: input, shape index: {}]
  %s1 = inlined_call_operand.vmem [shape: f32[16,10], index: 1, kind: input, shape index: {}]
  %s2 = inlined_call_operand.vmem [shape: bf16[10,512], index: 2, kind: input, shape index: {}]
  %s3 = inlined_call_operand.vmem [shape: f32[1,512], index: 3, kind: input, shape index: {}]
  %s4 = inlined_call_operand.vmem [shape: bf16[512,256], index: 4, kind: input, shape index: {}]
  %s5 = inlined_call_operand.vmem [shape: f32[1,256], index: 5, kind: input, shape index: {}]
  %s6 = inlined_call_operand.vmem [shape: bf16[256,64], index: 6, kind: input, shape index: {}]
  %s7 = inlined_call_operand.vmem [shape: f32[1,64], index: 7, kind: input, shape index: {}]
  %s8 = inlined_call_operand.vmem [shape: bf16[64,32], index: 8, kind: input, shape index: {}]
  %s9 = inlined_call_operand.vmem [shape: f32[1,32], index: 9, kind: input, shape index: {}]
  %s10 = inlined_call_operand.vmem [shape: bf16[32,10], index: 10, kind: input, shape index: {}]
  %s11 = inlined_call_operand.vmem [shape: f32[1,10], index: 11, kind: input, shape index: {}]
  %s12 = inlined_call_operand.hbm [shape: f32[16,10], index: 12, kind: output, shape index: {}]
  %s13 = sld [smem:[#allocation0]]
  $region58: #{net_forward.1} parent=0
    _
  %s15 = ssub.s32 1, %s13
  %s16 = scalar_select 0, %s15, %s13
  %17 = sst [smem:[#allocation2]] %s0
  $region1: #{net_forward.1} parent=0
    #allocation3 [shape = 'u8[8192]{0}', space=vmem, size = 0x2000, scoped, tag = 'output window, operand 0, single buffered']
    #allocation4 [shape = 's32[1]{0}', space=sflag, size = 0x4, scoped, tag = 'scoped memory for net_forward.1']
    %18 = vsyncpa [#allocation4], 0
    // Predicated region
    $region2: #{net_forward.1} parent=1 // pred_check
      _
    $region3: #{net_forward.1} parent=1 // pred_check_branch
      %20 = sbr.rel (0) target = $region5
    $region4: #{net_forward.1} parent=1 // pred_region
      _
    $region5: #{net_forward.1} parent=1 // pred_fallthru
      _
    // Predicated region
    $region6: #{net_forward.1} parent=1 // pred_check
      _
    $region7: #{net_forward.1} parent=1 // pred_check_branch
      %22 = sbr.rel (0) target = $region9
    $region8: #{net_forward.1} parent=1 // pred_region
      _
    $region9: #{net_forward.1} parent=1 // pred_fallthru
      _
    // Predicated region
    $region10: #{net_forward.1} parent=1 // pred_check
      _
    $region11: #{net_forward.1} parent=1 // pred_check_branch
      %24 = sbr.rel (0) target = $region13
    $region12: #{net_forward.1} parent=1 // pred_region
      _
    $region13: #{net_forward.1} parent=1 // pred_fallthru
      _
    // Predicated region
    $region14: #{net_forward.1} parent=1 // pred_check
      _
    $region15: #{net_forward.1} parent=1 // pred_check_branch
      %26 = sbr.rel (0) target = $region17
    $region16: #{net_forward.1} parent=1 // pred_region
      _
    $region17: #{net_forward.1} parent=1 // pred_fallthru
      _
    // Predicated region
    $region18: #{net_forward.1} parent=1 // pred_check
      _
    $region19: #{net_forward.1} parent=1 // pred_check_branch
      %28 = sbr.rel (0) target = $region21
    $region20: #{net_forward.1} parent=1 // pred_region
      _
    $region21: #{net_forward.1} parent=1 // pred_fallthru
      _
    // Predicated region
    $region22: #{net_forward.1} parent=1 // pred_check
      _
    $region23: #{net_forward.1} parent=1 // pred_check_branch
      %30 = sbr.rel (0) target = $region25
    $region24: #{net_forward.1} parent=1 // pred_region
      _
    $region25: #{net_forward.1} parent=1 // pred_fallthru
      _
    // Predicated region
    $region26: #{net_forward.1} parent=1 // pred_check
      _
    $region27: #{net_forward.1} parent=1 // pred_check_branch
      %32 = sbr.rel (0) target = $region29
    $region28: #{net_forward.1} parent=1 // pred_region
      _
    $region29: #{net_forward.1} parent=1 // pred_fallthru
      _
    // Predicated region
    $region30: #{net_forward.1} parent=1 // pred_check
      _
    $region31: #{net_forward.1} parent=1 // pred_check_branch
      %34 = sbr.rel (0) target = $region33
    $region32: #{net_forward.1} parent=1 // pred_region
      _
    $region33: #{net_forward.1} parent=1 // pred_fallthru
      _
    // Predicated region
    $region34: #{net_forward.1} parent=1 // pred_check
      _
    $region35: #{net_forward.1} parent=1 // pred_check_branch
      %36 = sbr.rel (0) target = $region37
    $region36: #{net_forward.1} parent=1 // pred_region
      _
    $region37: #{net_forward.1} parent=1 // pred_fallthru
      _
    // Predicated region
    $region38: #{net_forward.1} parent=1 // pred_check
      _
    $region39: #{net_forward.1} parent=1 // pred_check_branch
      %38 = sbr.rel (0) target = $region41
    $region40: #{net_forward.1} parent=1 // pred_region
      _
    $region41: #{net_forward.1} parent=1 // pred_fallthru
      _
    // Predicated region
    $region42: #{net_forward.1} parent=1 // pred_check
      _
    $region43: #{net_forward.1} parent=1 // pred_check_branch
      %40 = sbr.rel (0) target = $region45
    $region44: #{net_forward.1} parent=1 // pred_region
      _
    $region45: #{net_forward.1} parent=1 // pred_fallthru
      _
    // Predicated region
    $region46: #{net_forward.1} parent=1 // pred_check
      _
    $region47: #{net_forward.1} parent=1 // pred_check_branch
      %42 = sbr.rel (0) target = $region49
    $region48: #{net_forward.1} parent=1 // pred_region
      _
    $region49: #{net_forward.1} parent=1 // pred_fallthru
      _
    %v44 = vld [vmem:[%s1] sm:$0xff]
    %v45 = vld [vmem:[%s1 + $0x8] sm:$0xff]
    %v46 = vpack.c.bf16 %v45, %v44
    %v47 = vld [vmem:[%s2] sm:$0xff]
    %v48 = vld [vmem:[%s2 + $0x8] sm:$0xff]
    %v49 = vld [vmem:[%s2 + $0x10] sm:$0x11]
    %v50 = vld [vmem:[%s2 + $0x18] sm:$0x11]
    %v51 = vld [vmem:[%s3] sm:$0xf]
    %v53 = vlaneseq
    %v54 = vshrl.u32 %v53, 7
    %v55 = vsub.s32 0, %v54
    %v56 = vrot.slane %v51, %v55
    %v57 = vlaneseq
    %v58 = vshrl.u32 %v57, 7
    %v59 = vsub.s32 1, %v58
    %v60 = vrot.slane %v51, %v59
    %v61 = vlaneseq
    %v62 = vshrl.u32 %v61, 7
    %v63 = vsub.s32 2, %v62
    %v64 = vrot.slane %v51, %v63
    %v65 = vlaneseq
    %v66 = vshrl.u32 %v65, 7
    %v67 = vsub.s32 3, %v66
    %v68 = vrot.slane %v51, %v67
    %v77 = vunpack.c.l.b16 %v47
    %v78 = vunpack.c.h.b16 %v47
    %v79 = vunpack.c.l.b16 %v48
    %v80 = vunpack.c.h.b16 %v48
    %v81 = vunpack.c.l.b16 %v49
    %v82 = vunpack.c.h.b16 %v49
    %v83 = vunpack.c.l.b16 %v50
    %v84 = vunpack.c.h.b16 %v50
    %v85 = vpack.c.b16 %v81, %v77
    %v86 = vpack.c.b16 %v82, %v78
    %v87 = vpack.c.b16 %v83, %v79
    %v88 = vpack.c.b16 %v84, %v80
    %vm89 = vcmask 80896
    %v91 = vsel %vm89, %v46, 0
    %vm93 = vcmask 1044480
    %v95 = vsel %vm93, %v85, 0
    %v98 = vsel %vm93, %v86, 0
    %v101 = vsel %vm93, %v87, 0
    %v104 = vsel %vm93, %v88, 0
    %106 = vmatprep.subr.bf16.mxu0 0
    %107 = vmatpush1.bf16.msra.mxu0 0
    %108 = vmatprep.subr.bf16.mxu0 0
    %109 = vmatpush1.bf16.msra.mxu0 0
    %110 = vmatprep.subr.bf16.mxu0 0
    %111 = vmatpush1.bf16.msra.mxu0 0
    %112 = vmatprep.subr.bf16.mxu0 0
    %113 = vmatpush1.bf16.msra.mxu0 0
    %114 = vmatprep.subr.bf16.mxu0 0
    %115 = vmatpush1.bf16.msra.mxu0 0
    %116 = vmatprep.subr.bf16.mxu0 0
    %117 = vmatpush1.bf16.msra.mxu0 0
    %118 = vmatprep.subr.bf16.mxu0 0
    %119 = vmatpush1.bf16.msra.mxu0 0
    %120 = vmatprep.subr.bf16.mxu0 %v98
    %121 = vmatpush1.bf16.msra.mxu0 %v95
    %122 = vmatprep.subr.bf16.mxu0 0
    %123 = vmatpush2.bf16.msra.mxu0 0
    %124 = vmatprep.subr.bf16.mxu0 0
    %125 = vmatpush2.bf16.msra.mxu0 0
    %126 = vmatprep.subr.bf16.mxu0 0
    %127 = vmatpush2.bf16.msra.mxu0 0
    %128 = vmatprep.subr.bf16.mxu0 0
    %129 = vmatpush2.bf16.msra.mxu0 0
    %130 = vmatprep.subr.bf16.mxu0 0
    %131 = vmatpush2.bf16.msra.mxu0 0
    %132 = vmatprep.subr.bf16.mxu0 0
    %133 = vmatpush2.bf16.msra.mxu0 0
    %134 = vmatprep.subr.bf16.mxu0 0
    %135 = vmatpush2.bf16.msra.mxu0 0
    %136 = vmatprep.subr.bf16.mxu0 0
    %137 = vmatpush2.bf16.msra.mxu0 0
    %138 = vmatprep.mubr.bf16.mxu0 0
    %139 = vmatmul.mubr.bf16.gmra.mxu0 %v91
    %v140 = vpop.f32.mrf.mxu0
    %v141 = vadd.f32 %v56, %v140
    %v142 = vpop.f32.mrf.mxu0
    %v143 = vadd.f32 %v60, %v142
    %v144 = vpop.f32.mrf.mxu0
    %v145 = vadd.f32 %v56, %v144
    %v146 = vpop.f32.mrf.mxu0
    %v147 = vadd.f32 %v60, %v146
    %148 = vdwg.mxu0
    %149 = vmatprep.subr.bf16.mxu0 0
    %150 = vmatpush1.bf16.msra.mxu0 0
    %151 = vmatprep.subr.bf16.mxu0 0
    %152 = vmatpush1.bf16.msra.mxu0 0
    %153 = vmatprep.subr.bf16.mxu0 0
    %154 = vmatpush1.bf16.msra.mxu0 0
    %155 = vmatprep.subr.bf16.mxu0 0
    %156 = vmatpush1.bf16.msra.mxu0 0
    %157 = vmatprep.subr.bf16.mxu0 0
    %158 = vmatpush1.bf16.msra.mxu0 0
    %159 = vmatprep.subr.bf16.mxu0 0
    %160 = vmatpush1.bf16.msra.mxu0 0
    %161 = vmatprep.subr.bf16.mxu0 0
    %162 = vmatpush1.bf16.msra.mxu0 0
    %163 = vmatprep.subr.bf16.mxu0 %v104
    %164 = vmatpush1.bf16.msra.mxu0 %v101
    %165 = vmatprep.subr.bf16.mxu0 0
    %166 = vmatpush2.bf16.msra.mxu0 0
    %167 = vmatprep.subr.bf16.mxu0 0
    %168 = vmatpush2.bf16.msra.mxu0 0
    %169 = vmatprep.subr.bf16.mxu0 0
    %170 = vmatpush2.bf16.msra.mxu0 0
    %171 = vmatprep.subr.bf16.mxu0 0
    %172 = vmatpush2.bf16.msra.mxu0 0
    %173 = vmatprep.subr.bf16.mxu0 0
    %174 = vmatpush2.bf16.msra.mxu0 0
    %175 = vmatprep.subr.bf16.mxu0 0
    %176 = vmatpush2.bf16.msra.mxu0 0
    %177 = vmatprep.subr.bf16.mxu0 0
    %178 = vmatpush2.bf16.msra.mxu0 0
    %179 = vmatprep.subr.bf16.mxu0 0
    %180 = vmatpush2.bf16.msra.mxu0 0
    %181 = vmatprep.mubr.bf16.mxu0 0
    %182 = vmatmul.mubr.bf16.gmra.mxu0 %v91
    %v183 = vpop.f32.mrf.mxu0
    %v184 = vadd.f32 %v64, %v183
    %v185 = vpop.f32.mrf.mxu0
    %v186 = vadd.f32 %v68, %v185
    %v187 = vpop.f32.mrf.mxu0
    %v188 = vadd.f32 %v64, %v187
    %v189 = vpop.f32.mrf.mxu0
    %v190 = vadd.f32 %v68, %v189
    %191 = vdwg.mxu0
    %v192 = vmax.f32 %v141, 0.0
    %v193 = vmax.f32 %v143, 0.0
    %v194 = vmax.f32 %v184, 0.0
    %v195 = vmax.f32 %v186, 0.0
    %v196 = vmax.f32 %v145, 0.0
    %v197 = vmax.f32 %v147, 0.0
    %v198 = vmax.f32 %v188, 0.0
    %v199 = vmax.f32 %v190, 0.0
    %v200 = vpack.c.bf16 %v196, %v192
    %v201 = vpack.c.bf16 %v197, %v193
    %v202 = vpack.c.bf16 %v198, %v194
    %v203 = vpack.c.bf16 %v199, %v195
    %v204 = vld [vmem:[%s4] sm:$0xff]
    %v205 = vld [vmem:[%s4 + $0x8] sm:$0xff]
    %v206 = vld [vmem:[%s4 + $0x10] sm:$0xff]
    %v207 = vld [vmem:[%s4 + $0x18] sm:$0xff]
    %v208 = vld [vmem:[%s4 + $0x20] sm:$0xff]
    %v209 = vld [vmem:[%s4 + $0x28] sm:$0xff]
    %v210 = vld [vmem:[%s4 + $0x30] sm:$0xff]
    %v211 = vld [vmem:[%s4 + $0x38] sm:$0xff]
    %v212 = vld [vmem:[%s4 + $0x40] sm:$0xff]
    %v213 = vld [vmem:[%s4 + $0x48] sm:$0xff]
    %v214 = vld [vmem:[%s4 + $0x50] sm:$0xff]
    %v215 = vld [vmem:[%s4 + $0x58] sm:$0xff]
    %v216 = vld [vmem:[%s4 + $0x60] sm:$0xff]
    %v217 = vld [vmem:[%s4 + $0x68] sm:$0xff]
    %v218 = vld [vmem:[%s4 + $0x70] sm:$0xff]
    %v219 = vld [vmem:[%s4 + $0x78] sm:$0xff]
    %v220 = vld [vmem:[%s4 + $0x80] sm:$0xff]
    %v221 = vld [vmem:[%s4 + $0x88] sm:$0xff]
    %v222 = vld [vmem:[%s4 + $0x90] sm:$0xff]
    %v223 = vld [vmem:[%s4 + $0x98] sm:$0xff]
    %v224 = vld [vmem:[%s4 + $0xa0] sm:$0xff]
    %v225 = vld [vmem:[%s4 + $0xa8] sm:$0xff]
    %v226 = vld [vmem:[%s4 + $0xb0] sm:$0xff]
    %v227 = vld [vmem:[%s4 + $0xb8] sm:$0xff]
    %v228 = vld [vmem:[%s4 + $0xc0] sm:$0xff]
    %v229 = vld [vmem:[%s4 + $0xc8] sm:$0xff]
    %v230 = vld [vmem:[%s4 + $0xd0] sm:$0xff]
    %v231 = vld [vmem:[%s4 + $0xd8] sm:$0xff]
    %v232 = vld [vmem:[%s4 + $0xe0] sm:$0xff]
    %v233 = vld [vmem:[%s4 + $0xe8] sm:$0xff]
    %v234 = vld [vmem:[%s4 + $0xf0] sm:$0xff]
    %v235 = vld [vmem:[%s4 + $0xf8] sm:$0xff]
    %v236 = vld [vmem:[%s4 + $0x100] sm:$0xff]
    %v237 = vld [vmem:[%s4 + $0x108] sm:$0xff]
    %v238 = vld [vmem:[%s4 + $0x110] sm:$0xff]
    %v239 = vld [vmem:[%s4 + $0x118] sm:$0xff]
    %v240 = vld [vmem:[%s4 + $0x120] sm:$0xff]
    %v241 = vld [vmem:[%s4 + $0x128] sm:$0xff]
    %v242 = vld [vmem:[%s4 + $0x130] sm:$0xff]
    %v243 = vld [vmem:[%s4 + $0x138] sm:$0xff]
    %v244 = vld [vmem:[%s4 + $0x140] sm:$0xff]
    %v245 = vld [vmem:[%s4 + $0x148] sm:$0xff]
    %v246 = vld [vmem:[%s4 + $0x150] sm:$0xff]
    %v247 = vld [vmem:[%s4 + $0x158] sm:$0xff]
    %v248 = vld [vmem:[%s4 + $0x160] sm:$0xff]
    %v249 = vld [vmem:[%s4 + $0x168] sm:$0xff]
    %v250 = vld [vmem:[%s4 + $0x170] sm:$0xff]
    %v251 = vld [vmem:[%s4 + $0x178] sm:$0xff]
    %v252 = vld [vmem:[%s4 + $0x180] sm:$0xff]
    %v253 = vld [vmem:[%s4 + $0x188] sm:$0xff]
    %v254 = vld [vmem:[%s4 + $0x190] sm:$0xff]
    %v255 = vld [vmem:[%s4 + $0x198] sm:$0xff]
    %v256 = vld [vmem:[%s4 + $0x1a0] sm:$0xff]
    %v257 = vld [vmem:[%s4 + $0x1a8] sm:$0xff]
    %v258 = vld [vmem:[%s4 + $0x1b0] sm:$0xff]
    %v259 = vld [vmem:[%s4 + $0x1b8] sm:$0xff]
    %v260 = vld [vmem:[%s4 + $0x1c0] sm:$0xff]
    %v261 = vld [vmem:[%s4 + $0x1c8] sm:$0xff]
    %v262 = vld [vmem:[%s4 + $0x1d0] sm:$0xff]
    %v263 = vld [vmem:[%s4 + $0x1d8] sm:$0xff]
    %v264 = vld [vmem:[%s4 + $0x1e0] sm:$0xff]
    %v265 = vld [vmem:[%s4 + $0x1e8] sm:$0xff]
    %v266 = vld [vmem:[%s4 + $0x1f0] sm:$0xff]
    %v267 = vld [vmem:[%s4 + $0x1f8] sm:$0xff]
    %v268 = vld [vmem:[%s5] sm:$0x3]
    %v270 = vlaneseq
    %v271 = vshrl.u32 %v270, 7
    %v272 = vsub.s32 0, %v271
    %v273 = vrot.slane %v268, %v272
    %v274 = vlaneseq
    %v275 = vshrl.u32 %v274, 7
    %v276 = vsub.s32 1, %v275
    %v277 = vrot.slane %v268, %v276
    %v344 = vunpack.c.l.b16 %v204
    %v345 = vunpack.c.h.b16 %v204
    %v346 = vunpack.c.l.b16 %v205
    %v347 = vunpack.c.h.b16 %v205
    %v348 = vunpack.c.l.b16 %v206
    %v349 = vunpack.c.h.b16 %v206
    %v350 = vunpack.c.l.b16 %v207
    %v351 = vunpack.c.h.b16 %v207
    %v352 = vunpack.c.l.b16 %v208
    %v353 = vunpack.c.h.b16 %v208
    %v354 = vunpack.c.l.b16 %v209
    %v355 = vunpack.c.h.b16 %v209
    %v356 = vunpack.c.l.b16 %v210
    %v357 = vunpack.c.h.b16 %v210
    %v358 = vunpack.c.l.b16 %v211
    %v359 = vunpack.c.h.b16 %v211
    %v360 = vunpack.c.l.b16 %v212
    %v361 = vunpack.c.h.b16 %v212
    %v362 = vunpack.c.l.b16 %v213
    %v363 = vunpack.c.h.b16 %v213
    %v364 = vunpack.c.l.b16 %v214
    %v365 = vunpack.c.h.b16 %v214
    %v366 = vunpack.c.l.b16 %v215
    %v367 = vunpack.c.h.b16 %v215
    %v368 = vunpack.c.l.b16 %v216
    %v369 = vunpack.c.h.b16 %v216
    %v370 = vunpack.c.l.b16 %v217
    %v371 = vunpack.c.h.b16 %v217
    %v372 = vunpack.c.l.b16 %v218
    %v373 = vunpack.c.h.b16 %v218
    %v374 = vunpack.c.l.b16 %v219
    %v375 = vunpack.c.h.b16 %v219
    %v376 = vunpack.c.l.b16 %v220
    %v377 = vunpack.c.h.b16 %v220
    %v378 = vunpack.c.l.b16 %v221
    %v379 = vunpack.c.h.b16 %v221
    %v380 = vunpack.c.l.b16 %v222
    %v381 = vunpack.c.h.b16 %v222
    %v382 = vunpack.c.l.b16 %v223
    %v383 = vunpack.c.h.b16 %v223
    %v384 = vunpack.c.l.b16 %v224
    %v385 = vunpack.c.h.b16 %v224
    %v386 = vunpack.c.l.b16 %v225
    %v387 = vunpack.c.h.b16 %v225
    %v388 = vunpack.c.l.b16 %v226
    %v389 = vunpack.c.h.b16 %v226
    %v390 = vunpack.c.l.b16 %v227
    %v391 = vunpack.c.h.b16 %v227
    %v392 = vunpack.c.l.b16 %v228
    %v393 = vunpack.c.h.b16 %v228
    %v394 = vunpack.c.l.b16 %v229
    %v395 = vunpack.c.h.b16 %v229
    %v396 = vunpack.c.l.b16 %v230
    %v397 = vunpack.c.h.b16 %v230
    %v398 = vunpack.c.l.b16 %v231
    %v399 = vunpack.c.h.b16 %v231
    %v400 = vunpack.c.l.b16 %v232
    %v401 = vunpack.c.h.b16 %v232
    %v402 = vunpack.c.l.b16 %v233
    %v403 = vunpack.c.h.b16 %v233
    %v404 = vunpack.c.l.b16 %v234
    %v405 = vunpack.c.h.b16 %v234
    %v406 = vunpack.c.l.b16 %v235
    %v407 = vunpack.c.h.b16 %v235
    %v408 = vunpack.c.l.b16 %v236
    %v409 = vunpack.c.h.b16 %v236
    %v410 = vunpack.c.l.b16 %v237
    %v411 = vunpack.c.h.b16 %v237
    %v412 = vunpack.c.l.b16 %v238
    %v413 = vunpack.c.h.b16 %v238
    %v414 = vunpack.c.l.b16 %v239
    %v415 = vunpack.c.h.b16 %v239
    %v416 = vunpack.c.l.b16 %v240
    %v417 = vunpack.c.h.b16 %v240
    %v418 = vunpack.c.l.b16 %v241
    %v419 = vunpack.c.h.b16 %v241
    %v420 = vunpack.c.l.b16 %v242
    %v421 = vunpack.c.h.b16 %v242
    %v422 = vunpack.c.l.b16 %v243
    %v423 = vunpack.c.h.b16 %v243
    %v424 = vunpack.c.l.b16 %v244
    %v425 = vunpack.c.h.b16 %v244
    %v426 = vunpack.c.l.b16 %v245
    %v427 = vunpack.c.h.b16 %v245
    %v428 = vunpack.c.l.b16 %v246
    %v429 = vunpack.c.h.b16 %v246
    %v430 = vunpack.c.l.b16 %v247
    %v431 = vunpack.c.h.b16 %v247
    %v432 = vunpack.c.l.b16 %v248
    %v433 = vunpack.c.h.b16 %v248
    %v434 = vunpack.c.l.b16 %v249
    %v435 = vunpack.c.h.b16 %v249
    %v436 = vunpack.c.l.b16 %v250
    %v437 = vunpack.c.h.b16 %v250
    %v438 = vunpack.c.l.b16 %v251
    %v439 = vunpack.c.h.b16 %v251
    %v440 = vunpack.c.l.b16 %v252
    %v441 = vunpack.c.h.b16 %v252
    %v442 = vunpack.c.l.b16 %v253
    %v443 = vunpack.c.h.b16 %v253
    %v444 = vunpack.c.l.b16 %v254
    %v445 = vunpack.c.h.b16 %v254
    %v446 = vunpack.c.l.b16 %v255
    %v447 = vunpack.c.h.b16 %v255
    %v448 = vunpack.c.l.b16 %v256
    %v449 = vunpack.c.h.b16 %v256
    %v450 = vunpack.c.l.b16 %v257
    %v451 = vunpack.c.h.b16 %v257
    %v452 = vunpack.c.l.b16 %v258
    %v453 = vunpack.c.h.b16 %v258
    %v454 = vunpack.c.l.b16 %v259
    %v455 = vunpack.c.h.b16 %v259
    %v456 = vunpack.c.l.b16 %v260
    %v457 = vunpack.c.h.b16 %v260
    %v458 = vunpack.c.l.b16 %v261
    %v459 = vunpack.c.h.b16 %v261
    %v460 = vunpack.c.l.b16 %v262
    %v461 = vunpack.c.h.b16 %v262
    %v462 = vunpack.c.l.b16 %v263
    %v463 = vunpack.c.h.b16 %v263
    %v464 = vunpack.c.l.b16 %v264
    %v465 = vunpack.c.h.b16 %v264
    %v466 = vunpack.c.l.b16 %v265
    %v467 = vunpack.c.h.b16 %v265
    %v468 = vunpack.c.l.b16 %v266
    %v469 = vunpack.c.h.b16 %v266
    %v470 = vunpack.c.l.b16 %v267
    %v471 = vunpack.c.h.b16 %v267
    %v472 = vpack.c.b16 %v346, %v344
    %v473 = vpack.c.b16 %v347, %v345
    %v474 = vpack.c.b16 %v350, %v348
    %v475 = vpack.c.b16 %v351, %v349
    %v476 = vpack.c.b16 %v354, %v352
    %v477 = vpack.c.b16 %v355, %v353
    %v478 = vpack.c.b16 %v358, %v356
    %v479 = vpack.c.b16 %v359, %v357
    %v480 = vpack.c.b16 %v362, %v360
    %v481 = vpack.c.b16 %v363, %v361
    %v482 = vpack.c.b16 %v366, %v364
    %v483 = vpack.c.b16 %v367, %v365
    %v484 = vpack.c.b16 %v370, %v368
    %v485 = vpack.c.b16 %v371, %v369
    %v486 = vpack.c.b16 %v374, %v372
    %v487 = vpack.c.b16 %v375, %v373
    %v488 = vpack.c.b16 %v378, %v376
    %v489 = vpack.c.b16 %v379, %v377
    %v490 = vpack.c.b16 %v382, %v380
    %v491 = vpack.c.b16 %v383, %v381
    %v492 = vpack.c.b16 %v386, %v384
    %v493 = vpack.c.b16 %v387, %v385
    %v494 = vpack.c.b16 %v390, %v388
    %v495 = vpack.c.b16 %v391, %v389
    %v496 = vpack.c.b16 %v394, %v392
    %v497 = vpack.c.b16 %v395, %v393
    %v498 = vpack.c.b16 %v398, %v396
    %v499 = vpack.c.b16 %v399, %v397
    %v500 = vpack.c.b16 %v402, %v400
    %v501 = vpack.c.b16 %v403, %v401
    %v502 = vpack.c.b16 %v406, %v404
    %v503 = vpack.c.b16 %v407, %v405
    %v504 = vpack.c.b16 %v410, %v408
    %v505 = vpack.c.b16 %v411, %v409
    %v506 = vpack.c.b16 %v414, %v412
    %v507 = vpack.c.b16 %v415, %v413
    %v508 = vpack.c.b16 %v418, %v416
    %v509 = vpack.c.b16 %v419, %v417
    %v510 = vpack.c.b16 %v422, %v420
    %v511 = vpack.c.b16 %v423, %v421
    %v512 = vpack.c.b16 %v426, %v424
    %v513 = vpack.c.b16 %v427, %v425
    %v514 = vpack.c.b16 %v430, %v428
    %v515 = vpack.c.b16 %v431, %v429
    %v516 = vpack.c.b16 %v434, %v432
    %v517 = vpack.c.b16 %v435, %v433
    %v518 = vpack.c.b16 %v438, %v436
    %v519 = vpack.c.b16 %v439, %v437
    %v520 = vpack.c.b16 %v442, %v440
    %v521 = vpack.c.b16 %v443, %v441
    %v522 = vpack.c.b16 %v446, %v444
    %v523 = vpack.c.b16 %v447, %v445
    %v524 = vpack.c.b16 %v450, %v448
    %v525 = vpack.c.b16 %v451, %v449
    %v526 = vpack.c.b16 %v454, %v452
    %v527 = vpack.c.b16 %v455, %v453
    %v528 = vpack.c.b16 %v458, %v456
    %v529 = vpack.c.b16 %v459, %v457
    %v530 = vpack.c.b16 %v462, %v460
    %v531 = vpack.c.b16 %v463, %v461
    %v532 = vpack.c.b16 %v466, %v464
    %v533 = vpack.c.b16 %v467, %v465
    %v534 = vpack.c.b16 %v470, %v468
    %v535 = vpack.c.b16 %v471, %v469
    %600 = vmatprep.subr.bf16.mxu0 %v487
    %601 = vmatpush1.bf16.msra.mxu0 %v486
    %602 = vmatprep.subr.bf16.mxu0 %v485
    %603 = vmatpush1.bf16.msra.mxu0 %v484
    %604 = vmatprep.subr.bf16.mxu0 %v483
    %605 = vmatpush1.bf16.msra.mxu0 %v482
    %606 = vmatprep.subr.bf16.mxu0 %v481
    %607 = vmatpush1.bf16.msra.mxu0 %v480
    %608 = vmatprep.subr.bf16.mxu0 %v479
    %609 = vmatpush1.bf16.msra.mxu0 %v478
    %610 = vmatprep.subr.bf16.mxu0 %v477
    %611 = vmatpush1.bf16.msra.mxu0 %v476
    %612 = vmatprep.subr.bf16.mxu0 %v475
    %613 = vmatpush1.bf16.msra.mxu0 %v474
    %614 = vmatprep.subr.bf16.mxu0 %v473
    %615 = vmatpush1.bf16.msra.mxu0 %v472
    %616 = vmatprep.subr.bf16.mxu0 %v503
    %617 = vmatpush2.bf16.msra.mxu0 %v502
    %618 = vmatprep.subr.bf16.mxu0 %v501
    %619 = vmatpush2.bf16.msra.mxu0 %v500
    %620 = vmatprep.subr.bf16.mxu0 %v499
    %621 = vmatpush2.bf16.msra.mxu0 %v498
    %622 = vmatprep.subr.bf16.mxu0 %v497
    %623 = vmatpush2.bf16.msra.mxu0 %v496
    %624 = vmatprep.subr.bf16.mxu0 %v495
    %625 = vmatpush2.bf16.msra.mxu0 %v494
    %626 = vmatprep.subr.bf16.mxu0 %v493
    %627 = vmatpush2.bf16.msra.mxu0 %v492
    %628 = vmatprep.subr.bf16.mxu0 %v491
    %629 = vmatpush2.bf16.msra.mxu0 %v490
    %630 = vmatprep.subr.bf16.mxu0 %v489
    %631 = vmatpush2.bf16.msra.mxu0 %v488
    %632 = vmatprep.mubr.bf16.mxu0 %v201
    %633 = vmatmul.mubr.bf16.gmra.mxu0 %v200
    %v634 = vpop.f32.mrf.mxu0
    %v635 = vadd.f32 %v273, %v634
    %v636 = vpop.f32.mrf.mxu0
    %v637 = vadd.f32 %v277, %v636
    %v638 = vpop.f32.mrf.mxu0
    %v639 = vadd.f32 %v273, %v638
    %v640 = vpop.f32.mrf.mxu0
    %v641 = vadd.f32 %v277, %v640
    %642 = vdwg.mxu0
    %643 = vmatprep.subr.bf16.mxu0 %v519
    %644 = vmatpush1.bf16.msra.mxu0 %v518
    %645 = vmatprep.subr.bf16.mxu0 %v517
    %646 = vmatpush1.bf16.msra.mxu0 %v516
    %647 = vmatprep.subr.bf16.mxu0 %v515
    %648 = vmatpush1.bf16.msra.mxu0 %v514
    %649 = vmatprep.subr.bf16.mxu0 %v513
    %650 = vmatpush1.bf16.msra.mxu0 %v512
    %651 = vmatprep.subr.bf16.mxu0 %v511
    %652 = vmatpush1.bf16.msra.mxu0 %v510
    %653 = vmatprep.subr.bf16.mxu0 %v509
    %654 = vmatpush1.bf16.msra.mxu0 %v508
    %655 = vmatprep.subr.bf16.mxu0 %v507
    %656 = vmatpush1.bf16.msra.mxu0 %v506
    %657 = vmatprep.subr.bf16.mxu0 %v505
    %658 = vmatpush1.bf16.msra.mxu0 %v504
    %659 = vmatprep.subr.bf16.mxu0 %v535
    %660 = vmatpush2.bf16.msra.mxu0 %v534
    %661 = vmatprep.subr.bf16.mxu0 %v533
    %662 = vmatpush2.bf16.msra.mxu0 %v532
    %663 = vmatprep.subr.bf16.mxu0 %v531
    %664 = vmatpush2.bf16.msra.mxu0 %v530
    %665 = vmatprep.subr.bf16.mxu0 %v529
    %666 = vmatpush2.bf16.msra.mxu0 %v528
    %667 = vmatprep.subr.bf16.mxu0 %v527
    %668 = vmatpush2.bf16.msra.mxu0 %v526
    %669 = vmatprep.subr.bf16.mxu0 %v525
    %670 = vmatpush2.bf16.msra.mxu0 %v524
    %671 = vmatprep.subr.bf16.mxu0 %v523
    %672 = vmatpush2.bf16.msra.mxu0 %v522
    %673 = vmatprep.subr.bf16.mxu0 %v521
    %674 = vmatpush2.bf16.msra.mxu0 %v520
    %675 = vmatprep.mubr.bf16.mxu0 %v203
    %676 = vmatmul.mubr.bf16.gmra.mxu0 %v202
    %v677 = vpop.f32.mrf.mxu0
    %v678 = vadd.f32 %v635, %v677
    %v679 = vpop.f32.mrf.mxu0
    %v680 = vadd.f32 %v637, %v679
    %v681 = vpop.f32.mrf.mxu0
    %v682 = vadd.f32 %v639, %v681
    %v683 = vpop.f32.mrf.mxu0
    %v684 = vadd.f32 %v641, %v683
    %685 = vdwg.mxu0
    %v686 = vmax.f32 %v678, 0.0
    %v687 = vmax.f32 %v680, 0.0
    %v688 = vmax.f32 %v682, 0.0
    %v689 = vmax.f32 %v684, 0.0
    %v690 = vpack.c.bf16 %v688, %v686
    %v691 = vpack.c.bf16 %v689, %v687
    %v692 = vld [vmem:[%s6] sm:$0xf]
    %v693 = vld [vmem:[%s6 + $0x4] sm:$0xf]
    %v694 = vld [vmem:[%s6 + $0x8] sm:$0xf]
    %v695 = vld [vmem:[%s6 + $0xc] sm:$0xf]
    %v696 = vld [vmem:[%s6 + $0x10] sm:$0xf]
    %v697 = vld [vmem:[%s6 + $0x14] sm:$0xf]
    %v698 = vld [vmem:[%s6 + $0x18] sm:$0xf]
    %v699 = vld [vmem:[%s6 + $0x1c] sm:$0xf]
    %v700 = vld [vmem:[%s6 + $0x20] sm:$0xf]
    %v701 = vld [vmem:[%s6 + $0x24] sm:$0xf]
    %v702 = vld [vmem:[%s6 + $0x28] sm:$0xf]
    %v703 = vld [vmem:[%s6 + $0x2c] sm:$0xf]
    %v704 = vld [vmem:[%s6 + $0x30] sm:$0xf]
    %v705 = vld [vmem:[%s6 + $0x34] sm:$0xf]
    %v706 = vld [vmem:[%s6 + $0x38] sm:$0xf]
    %v707 = vld [vmem:[%s6 + $0x3c] sm:$0xf]
    %v708 = vld [vmem:[%s6 + $0x40] sm:$0xf]
    %v709 = vld [vmem:[%s6 + $0x44] sm:$0xf]
    %v710 = vld [vmem:[%s6 + $0x48] sm:$0xf]
    %v711 = vld [vmem:[%s6 + $0x4c] sm:$0xf]
    %v712 = vld [vmem:[%s6 + $0x50] sm:$0xf]
    %v713 = vld [vmem:[%s6 + $0x54] sm:$0xf]
    %v714 = vld [vmem:[%s6 + $0x58] sm:$0xf]
    %v715 = vld [vmem:[%s6 + $0x5c] sm:$0xf]
    %v716 = vld [vmem:[%s6 + $0x60] sm:$0xf]
    %v717 = vld [vmem:[%s6 + $0x64] sm:$0xf]
    %v718 = vld [vmem:[%s6 + $0x68] sm:$0xf]
    %v719 = vld [vmem:[%s6 + $0x6c] sm:$0xf]
    %v720 = vld [vmem:[%s6 + $0x70] sm:$0xf]
    %v721 = vld [vmem:[%s6 + $0x74] sm:$0xf]
    %v722 = vld [vmem:[%s6 + $0x78] sm:$0xf]
    %v723 = vld [vmem:[%s6 + $0x7c] sm:$0xf]
    %v724 = vld [vmem:[%s7] sm:$0x1]
    %v726 = vlaneseq
    %v727 = vshrl.u32 %v726, 7
    %v728 = vsub.s32 0, %v727
    %v729 = vrot.slane %v724, %v728
    %v763 = vunpack.c.l.b16 %v692
    %v764 = vunpack.c.l.b16 %v693
    %v765 = vunpack.c.l.b16 %v694
    %v766 = vunpack.c.l.b16 %v695
    %v767 = vunpack.c.l.b16 %v696
    %v768 = vunpack.c.l.b16 %v697
    %v769 = vunpack.c.l.b16 %v698
    %v770 = vunpack.c.l.b16 %v699
    %v771 = vunpack.c.l.b16 %v700
    %v772 = vunpack.c.l.b16 %v701
    %v773 = vunpack.c.l.b16 %v702
    %v774 = vunpack.c.l.b16 %v703
    %v775 = vunpack.c.l.b16 %v704
    %v776 = vunpack.c.l.b16 %v705
    %v777 = vunpack.c.l.b16 %v706
    %v778 = vunpack.c.l.b16 %v707
    %v779 = vunpack.c.l.b16 %v708
    %v780 = vunpack.c.l.b16 %v709
    %v781 = vunpack.c.l.b16 %v710
    %v782 = vunpack.c.l.b16 %v711
    %v783 = vunpack.c.l.b16 %v712
    %v784 = vunpack.c.l.b16 %v713
    %v785 = vunpack.c.l.b16 %v714
    %v786 = vunpack.c.l.b16 %v715
    %v787 = vunpack.c.l.b16 %v716
    %v788 = vunpack.c.l.b16 %v717
    %v789 = vunpack.c.l.b16 %v718
    %v790 = vunpack.c.l.b16 %v719
    %v791 = vunpack.c.l.b16 %v720
    %v792 = vunpack.c.l.b16 %v721
    %v793 = vunpack.c.l.b16 %v722
    %v794 = vunpack.c.l.b16 %v723
    %v795 = vpack.c.b16 %v764, %v763
    %v796 = vpack.c.b16 %v766, %v765
    %v797 = vpack.c.b16 %v768, %v767
    %v798 = vpack.c.b16 %v770, %v769
    %v799 = vpack.c.b16 %v772, %v771
    %v800 = vpack.c.b16 %v774, %v773
    %v801 = vpack.c.b16 %v776, %v775
    %v802 = vpack.c.b16 %v778, %v777
    %v803 = vpack.c.b16 %v780, %v779
    %v804 = vpack.c.b16 %v782, %v781
    %v805 = vpack.c.b16 %v784, %v783
    %v806 = vpack.c.b16 %v786, %v785
    %v807 = vpack.c.b16 %v788, %v787
    %v808 = vpack.c.b16 %v790, %v789
    %v809 = vpack.c.b16 %v792, %v791
    %v810 = vpack.c.b16 %v794, %v793
    %827 = vmatprep.subr.bf16.mxu0 0
    %828 = vmatpush1.bf16.msra.mxu0 %v802
    %829 = vmatprep.subr.bf16.mxu0 0
    %830 = vmatpush1.bf16.msra.mxu0 %v801
    %831 = vmatprep.subr.bf16.mxu0 0
    %832 = vmatpush1.bf16.msra.mxu0 %v800
    %833 = vmatprep.subr.bf16.mxu0 0
    %834 = vmatpush1.bf16.msra.mxu0 %v799
    %835 = vmatprep.subr.bf16.mxu0 0
    %836 = vmatpush1.bf16.msra.mxu0 %v798
    %837 = vmatprep.subr.bf16.mxu0 0
    %838 = vmatpush1.bf16.msra.mxu0 %v797
    %839 = vmatprep.subr.bf16.mxu0 0
    %840 = vmatpush1.bf16.msra.mxu0 %v796
    %841 = vmatprep.subr.bf16.mxu0 0
    %842 = vmatpush1.bf16.msra.mxu0 %v795
    %843 = vmatprep.subr.bf16.mxu0 0
    %844 = vmatpush2.bf16.msra.mxu0 %v810
    %845 = vmatprep.subr.bf16.mxu0 0
    %846 = vmatpush2.bf16.msra.mxu0 %v809
    %847 = vmatprep.subr.bf16.mxu0 0
    %848 = vmatpush2.bf16.msra.mxu0 %v808
    %849 = vmatprep.subr.bf16.mxu0 0
    %850 = vmatpush2.bf16.msra.mxu0 %v807
    %851 = vmatprep.subr.bf16.mxu0 0
    %852 = vmatpush2.bf16.msra.mxu0 %v806
    %853 = vmatprep.subr.bf16.mxu0 0
    %854 = vmatpush2.bf16.msra.mxu0 %v805
    %855 = vmatprep.subr.bf16.mxu0 0
    %856 = vmatpush2.bf16.msra.mxu0 %v804
    %857 = vmatprep.subr.bf16.mxu0 0
    %858 = vmatpush2.bf16.msra.mxu0 %v803
    %859 = vmatprep.mubr.bf16.mxu0 %v691
    %860 = vmatmul.mubr.bf16.gmra.mxu0 %v690
    %v861 = vpop.f32.mrf.mxu0
    %v862 = vadd.f32 %v729, %v861
    %v863 = vpop.f32.mrf.mxu0
    %v864 = vpop.f32.mrf.mxu0
    %v865 = vadd.f32 %v729, %v864
    %v866 = vpop.f32.mrf.mxu0
    %867 = vdwg.mxu0
    %v868 = vmax.f32 %v862, 0.0
    %v869 = vmax.f32 %v865, 0.0
    %v870 = vpack.c.bf16 %v869, %v868
    %v871 = vld [vmem:[%s8] sm:$0xf]
    %v872 = vld [vmem:[%s8 + $0x4] sm:$0xf]
    %v873 = vld [vmem:[%s8 + $0x8] sm:$0xf]
    %v874 = vld [vmem:[%s8 + $0xc] sm:$0xf]
    %v875 = vld [vmem:[%s8 + $0x10] sm:$0xf]
    %v876 = vld [vmem:[%s8 + $0x14] sm:$0xf]
    %v877 = vld [vmem:[%s8 + $0x18] sm:$0xf]
    %v878 = vld [vmem:[%s8 + $0x1c] sm:$0xf]
    %v879 = vld [vmem:[%s9] sm:$0x1]
    %v881 = vlaneseq
    %v882 = vshrl.u32 %v881, 7
    %v883 = vsub.s32 0, %v882
    %v884 = vrot.slane %v879, %v883
    %v894 = vunpack.c.l.b16 %v871
    %v895 = vunpack.c.l.b16 %v872
    %v896 = vunpack.c.l.b16 %v873
    %v897 = vunpack.c.l.b16 %v874
    %v898 = vunpack.c.l.b16 %v875
    %v899 = vunpack.c.l.b16 %v876
    %v900 = vunpack.c.l.b16 %v877
    %v901 = vunpack.c.l.b16 %v878
    %v902 = vpack.c.b16 %v895, %v894
    %v903 = vpack.c.b16 %v897, %v896
    %v904 = vpack.c.b16 %v899, %v898
    %v905 = vpack.c.b16 %v901, %v900
    %vm910 = vcmask 523264
    %v912 = vsel %vm910, %v870, 0
    %914 = vmatprep.subr.bf16.mxu0 0
    %915 = vmatpush1.bf16.msra.mxu0 0
    %916 = vmatprep.subr.bf16.mxu0 0
    %917 = vmatpush1.bf16.msra.mxu0 0
    %918 = vmatprep.subr.bf16.mxu0 0
    %919 = vmatpush1.bf16.msra.mxu0 0
    %920 = vmatprep.subr.bf16.mxu0 0
    %921 = vmatpush1.bf16.msra.mxu0 0
    %922 = vmatprep.subr.bf16.mxu0 0
    %923 = vmatpush1.bf16.msra.mxu0 %v905
    %924 = vmatprep.subr.bf16.mxu0 0
    %925 = vmatpush1.bf16.msra.mxu0 %v904
    %926 = vmatprep.subr.bf16.mxu0 0
    %927 = vmatpush1.bf16.msra.mxu0 %v903
    %928 = vmatprep.subr.bf16.mxu0 0
    %929 = vmatpush1.bf16.msra.mxu0 %v902
    %930 = vmatprep.subr.bf16.mxu0 0
    %931 = vmatpush2.bf16.msra.mxu0 0
    %932 = vmatprep.subr.bf16.mxu0 0
    %933 = vmatpush2.bf16.msra.mxu0 0
    %934 = vmatprep.subr.bf16.mxu0 0
    %935 = vmatpush2.bf16.msra.mxu0 0
    %936 = vmatprep.subr.bf16.mxu0 0
    %937 = vmatpush2.bf16.msra.mxu0 0
    %938 = vmatprep.subr.bf16.mxu0 0
    %939 = vmatpush2.bf16.msra.mxu0 0
    %940 = vmatprep.subr.bf16.mxu0 0
    %941 = vmatpush2.bf16.msra.mxu0 0
    %942 = vmatprep.subr.bf16.mxu0 0
    %943 = vmatpush2.bf16.msra.mxu0 0
    %944 = vmatprep.subr.bf16.mxu0 0
    %945 = vmatpush2.bf16.msra.mxu0 0
    %946 = vmatprep.mubr.bf16.mxu0 0
    %947 = vmatmul.mubr.bf16.gmra.mxu0 %v912
    %v948 = vpop.f32.mrf.mxu0
    %v949 = vadd.f32 %v884, %v948
    %v950 = vpop.f32.mrf.mxu0
    %v951 = vpop.f32.mrf.mxu0
    %v952 = vadd.f32 %v884, %v951
    %v953 = vpop.f32.mrf.mxu0
    %954 = vdwg.mxu0
    %v955 = vmax.f32 %v949, 0.0
    %v956 = vmax.f32 %v952, 0.0
    %v957 = vpack.c.bf16 %v956, %v955
    %v958 = vld [vmem:[%s10] sm:$0xf]
    %v959 = vld [vmem:[%s10 + $0x4] sm:$0xf]
    %v960 = vld [vmem:[%s10 + $0x8] sm:$0xf]
    %v961 = vld [vmem:[%s10 + $0xc] sm:$0xf]
    %v962 = vld [vmem:[%s11] sm:$0x1]
    %v964 = vlaneseq
    %v965 = vshrl.u32 %v964, 7
    %v966 = vsub.s32 0, %v965
    %v967 = vrot.slane %v962, %v966
    %v973 = vunpack.c.l.b16 %v958
    %v974 = vunpack.c.l.b16 %v959
    %v975 = vunpack.c.l.b16 %v960
    %v976 = vunpack.c.l.b16 %v961
    %v977 = vpack.c.b16 %v974, %v973
    %v978 = vpack.c.b16 %v976, %v975
    %vm981 = vcmask 261120
    %v983 = vsel %vm981, %v957, 0
    %985 = vmatprep.subr.bf16.mxu0 0
    %986 = vmatpush1.bf16.msra.mxu0 0
    %987 = vmatprep.subr.bf16.mxu0 0
    %988 = vmatpush1.bf16.msra.mxu0 0
    %989 = vmatprep.subr.bf16.mxu0 0
    %990 = vmatpush1.bf16.msra.mxu0 0
    %991 = vmatprep.subr.bf16.mxu0 0
    %992 = vmatpush1.bf16.msra.mxu0 0
    %993 = vmatprep.subr.bf16.mxu0 0
    %994 = vmatpush1.bf16.msra.mxu0 0
    %995 = vmatprep.subr.bf16.mxu0 0
    %996 = vmatpush1.bf16.msra.mxu0 0
    %997 = vmatprep.subr.bf16.mxu0 0
    %998 = vmatpush1.bf16.msra.mxu0 %v978
    %999 = vmatprep.subr.bf16.mxu0 0
    %1000 = vmatpush1.bf16.msra.mxu0 %v977
    %1001 = vmatprep.subr.bf16.mxu0 0
    %1002 = vmatpush2.bf16.msra.mxu0 0
    %1003 = vmatprep.subr.bf16.mxu0 0
    %1004 = vmatpush2.bf16.msra.mxu0 0
    %1005 = vmatprep.subr.bf16.mxu0 0
    %1006 = vmatpush2.bf16.msra.mxu0 0
    %1007 = vmatprep.subr.bf16.mxu0 0
    %1008 = vmatpush2.bf16.msra.mxu0 0
    %1009 = vmatprep.subr.bf16.mxu0 0
    %1010 = vmatpush2.bf16.msra.mxu0 0
    %1011 = vmatprep.subr.bf16.mxu0 0
    %1012 = vmatpush2.bf16.msra.mxu0 0
    %1013 = vmatprep.subr.bf16.mxu0 0
    %1014 = vmatpush2.bf16.msra.mxu0 0
    %1015 = vmatprep.subr.bf16.mxu0 0
    %1016 = vmatpush2.bf16.msra.mxu0 0
    %1017 = vmatprep.mubr.bf16.mxu0 0
    %1018 = vmatmul.mubr.bf16.gmra.mxu0 %v983
    %v1019 = vpop.f32.mrf.mxu0
    %v1020 = vadd.f32 %v967, %v1019
    %v1021 = vpop.f32.mrf.mxu0
    %v1022 = vpop.f32.mrf.mxu0
    %v1023 = vadd.f32 %v967, %v1022
    %v1024 = vpop.f32.mrf.mxu0
    %1025 = vdwg.mxu0
    %v1026 = vxor.u32 %v1020, 2147483648
    %v1027 = vxor.u32 %v1023, 2147483648
    %v1028 = vmul.f32 %v1026, 1.442695
    %v1029 = vpow.pop %v1028
    %v1030 = vmul.f32 %v1027, 1.442695
    %v1031 = vpow.pop %v1030
    %v1032 = vadd.f32 %v1029, 1.0
    %v1033 = vadd.f32 %v1031, 1.0
    %v1034 = vrcp.pop %v1032
    %v1035 = vmul.f32 1.0, %v1034
    %v1036 = vrcp.pop %v1033
    %v1037 = vmul.f32 1.0, %v1036
    %s1038 = sld [smem:[#allocation2]]
    %v1039 = vstv %s1038
    %v1040 = vmul.f32 %v1035, %v1039
    %v1041 = vmul.f32 %v1037, %v1039
    %1042 = vst.msk [vmem:[#allocation3] sm:$0xff] %vm89, %v1040
    %1043 = vst.msk [vmem:[#allocation3 + $0x8] sm:$0xff] %vm89, %v1041
    // Predicated region
    $region50: #{net_forward.1} parent=1 // pred_check
      _
    $region51: #{net_forward.1} parent=1 // pred_check_branch
      %1045 = sbr.rel (0) target = $region53
    $region52: #{net_forward.1} parent=1 // pred_region
      %s1047 = ssub.s32 256, 256
      %1048 = vsyncadd [#allocation4], %s1047
      %s1049 = sshll.u32 [#allocation3], 4
      %s1050 = int_to_ptr.vmem [resolvable:$true] %s1049
      %1055 = dma.vmem_to_hbm [thread:$0]  %s1050, 256, %s12, [#allocation4], 128, 128, 8
    $region53: #{net_forward.1} parent=1 // pred_fallthru
      _
    // Predicated region
    $region54: #{net_forward.1} parent=1 // pred_check
      _
    $region55: #{net_forward.1} parent=1 // pred_check_branch
      %1057 = sbr.rel (0) target = $region57
    $region56: #{net_forward.1} parent=1 // pred_region
      %1058 = dma.done [#allocation4], 256
    $region57: #{net_forward.1} parent=1 // pred_fallthru
      _
    %1059 = vsyncpa [#allocation4], 1

</llo_original>
